<compile_context>
chip_gen: v7x
topology: tpu7x:2x2x1
jax: 0.10.0
libtpu: 0.0.40
codegen_flags: <defaults>
</compile_context>

<pallas_src>
import functools
import itertools

import jax
import jax.numpy as jnp
import numpy as np
from jax.experimental import pallas as pl
from jax.experimental.pallas import tpu as pltpu

try:
    from scipy.optimize import linear_sum_assignment as _lsa
except Exception:  # pragma: no cover
    _lsa = None


def _lsa_bruteforce(cost):
    """Exact assignment for small rectangular matrices (fallback if scipy absent)."""
    cost = np.asarray(cost, dtype=np.float64)
    n_r, n_c = cost.shape
    if n_r <= n_c:
        best_sum, best_perm = None, None
        rows = np.arange(n_r)
        for perm in itertools.permutations(range(n_c), n_r):
            s = cost[rows, list(perm)].sum() if n_r else 0.0
            if best_sum is None or s < best_sum:
                best_sum, best_perm = s, perm
        return rows.astype(np.int64), np.asarray(best_perm, dtype=np.int64)
    else:
        c, r = _lsa_bruteforce(cost.T)
        order = np.argsort(r)
        return r[order].astype(np.int64), c[order].astype(np.int64)


def linear_sum_assignment(cost):
    if _lsa is not None:
        r, c = _lsa(np.asarray(cost))
        return np.asarray(r, np.int64), np.asarray(c, np.int64)
    return _lsa_bruteforce(cost)


# ----------------------------- Pallas kernel ------------------------------- #
def _cost_kernel(logits_ref, pfeat_ref, onehot_ref, tfeat_ref, out_ref,
                 *, w_class, w_giou, eps):
    # --- class cost: un-normalized exp (f32) -> bf16 MXU one-hot gather;
    #     softmax normalization + w_class folded into a single (TQ,1) scale ---
    logits = logits_ref[...]                                        # (TQ, C_pad) f32
    m = jnp.max(logits, axis=-1, keepdims=True)
    e = jnp.exp(logits - m)                                         # EUP, f32
    scale = w_class * pl.reciprocal(jnp.sum(e, axis=-1, keepdims=True),
                                    approx=True)                    # (TQ, 1)
    cls = jnp.dot(e.astype(jnp.bfloat16), onehot_ref[...],
                  preferred_element_type=jnp.float32)               # (TQ, T_pad)

    # --- box costs (corners + w_bbox-scaled cxcywh precomputed in the wrapper) ---
    p = pfeat_ref[...]                                              # (TQ, 8)
    t = tfeat_ref[...]                                              # (8, T_pad)
    pxc, pyc, pw, ph = p[:, 0:1], p[:, 1:2], p[:, 2:3], p[:, 3:4]   # already * w_bbox
    px1, py1, px2, py2 = p[:, 4:5], p[:, 5:6], p[:, 6:7], p[:, 7:8]
    txc, tyc, tw, th = t[0:1, :], t[1:2, :], t[2:3, :], t[3:4, :]   # already * w_bbox
    tx1, ty1, tx2, ty2 = t[4:5, :], t[5:6, :], t[6:7, :], t[7:8, :]

    # L1 cdist (w_bbox folded into the operands) + class cost, accumulated in place
    cost = (jnp.abs(pxc - txc) + jnp.abs(pyc - tyc)
            + jnp.abs(pw - tw) + jnp.abs(ph - th))
    cost = cost - cls * scale

    # GIoU; divides on the EUP slot via approx reciprocal (+eps for safety)
    iw = jnp.maximum(jnp.minimum(px2, tx2) - jnp.maximum(px1, tx1), 0.0)
    ih = jnp.maximum(jnp.minimum(py2, ty2) - jnp.maximum(py1, ty1), 0.0)
    inter = iw * ih                                                 # (TQ, T_pad)
    area_p = (px2 - px1) * (py2 - py1)                              # (TQ, 1)
    area_t = (tx2 - tx1) * (ty2 - ty1)                              # (1, T_pad)
    union = area_p + area_t - inter
    # enclosing extents are non-negative for valid (x2>=x1, y2>=y1) boxes: no clamp
    ew = jnp.maximum(px2, tx2) - jnp.minimum(px1, tx1)
    eh = jnp.maximum(py2, ty2) - jnp.minimum(py1, ty1)
    enclose = ew * eh
    inv_u = pl.reciprocal(union + eps, approx=True)
    inv_e = pl.reciprocal(enclose + eps, approx=True)
    giou = inter * inv_u - (enclose - union) * inv_e
    out_ref[...] = cost - w_giou * giou


# ------------------------------ wrapper ------------------------------------ #
def _round_up(x, m):
    return ((x + m - 1) // m) * m


def _features(cxcywh, w_bbox):
    """[w_bbox*cx, w_bbox*cy, w_bbox*w, w_bbox*h, x1, y1, x2, y2] along the last axis."""
    c, s = cxcywh[..., :2], cxcywh[..., 2:]
    return jnp.concatenate([w_bbox * cxcywh, c - 0.5 * s, c + 0.5 * s], axis=-1)


def _choose_query_tile(B, Q, C_pad, T_pad):
    TQ = _round_up(Q, 8)
    # keep both v7x TensorCores busy when the batch alone doesn't give >= 2 grid steps
    if B == 1 and TQ > 8:
        TQ = _round_up((Q + 1) // 2, 8)
    # soft cap: double-buffered per-step f32 slabs stay well under VMEM on all gens
    budget = 16 * 1024 * 1024
    while TQ > 8 and 2 * 4 * TQ * (C_pad + 2 * T_pad) > budget:
        TQ = _round_up(TQ // 2, 8)
    return TQ


@functools.partial(jax.jit, static_argnames=("w_class", "w_bbox", "w_giou"))
def _cost_blocks_device(pred_logits, pred_boxes, labels_pad, tboxes_pad,
                        *, w_class, w_bbox, w_giou):
    B, Q, C = map(int, pred_logits.shape)
    T_pad = int(labels_pad.shape[1])
    C_pad = _round_up(C, 128)                       # MXU K-dim alignment
    TQ = _choose_query_tile(B, Q, C_pad, T_pad)
    Q_pad = _round_up(Q, TQ)
    n_qt = Q_pad // TQ

    # pad classes (and padded query rows) at -1e9 -> exp underflows to 0, softmax exact
    logits = jnp.pad(pred_logits.astype(jnp.float32),
                     ((0, 0), (0, Q_pad - Q), (0, C_pad - C)),
                     constant_values=-1e9)

    # predicted-box features; padded query rows get a valid dummy box
    pb = jnp.pad(pred_boxes.astype(jnp.float32),
                 ((0, 0), (0, Q_pad - Q), (0, 0)), constant_values=0.25)
    pfeat = _features(pb, w_bbox)                                   # (B, Q_pad, 8)

    # batched one-hot (sentinel label -1 -> all-zero column) and target features
    onehot = jnp.swapaxes(
        jax.nn.one_hot(labels_pad, C_pad, dtype=jnp.bfloat16), 1, 2)  # (B, C_pad, T_pad)
    tfeat = jnp.swapaxes(
        _features(tboxes_pad.astype(jnp.float32), w_bbox), 1, 2)      # (B, 8, T_pad)

    kernel = functools.partial(_cost_kernel, w_class=float(w_class),
                               w_giou=float(w_giou), eps=1e-8)
    cost_estimate = pl.CostEstimate(
        flops=int(2 * B * Q_pad * C_pad * T_pad + 40 * B * Q_pad * T_pad),
        transcendentals=int(B * Q_pad * C_pad),
        bytes_accessed=int(4 * B * Q_pad * (C_pad + 8)
                           + n_qt * B * (2 * C_pad * T_pad + 4 * 8 * T_pad)
                           + 4 * B * Q_pad * T_pad),
    )
    cost = pl.pallas_call(
        kernel,
        out_shape=jax.ShapeDtypeStruct((B, Q_pad, T_pad), jnp.float32),
        grid_spec=pltpu.PrefetchScalarGridSpec(
            num_scalar_prefetch=0,
            grid=(B, n_qt),
            in_specs=[
                pl.BlockSpec((None, TQ, C_pad), lambda b, q: (b, q, 0)),
                pl.BlockSpec((None, TQ, 8), lambda b, q: (b, q, 0)),
                pl.BlockSpec((None, C_pad, T_pad), lambda b, q: (b, 0, 0)),
                pl.BlockSpec((None, 8, T_pad), lambda b, q: (b, 0, 0)),
            ],
            out_specs=pl.BlockSpec((None, TQ, T_pad), lambda b, q: (b, q, 0)),
        ),
        compiler_params=pltpu.CompilerParams(
            dimension_semantics=("parallel", "parallel")),
        cost_estimate=cost_estimate,
    )(logits, pfeat, onehot, tfeat)
    # only the real query rows are consumed by the host matcher
    return cost[:, :Q, :]


def compute_cost_blocks(pred_logits, pred_boxes, labels_list, boxes_list,
                        *, cost_class=1.0, cost_bbox=1.0, cost_giou=1.0):
    """Per-image DETR matching-cost blocks, computed in Pallas.

    Returns (B, Q, T_pad) f32; only [b, :, :len(boxes_list[b])] is meaningful and
    equals the reference C[b][:, off_b:off_b+T_b] block."""
    B = int(pred_logits.shape[0])
    sizes = [int(l.shape[0]) for l in labels_list]
    T_pad = _round_up(max(max(sizes), 1), 128)      # lane-dense output / MXU N dim

    # host-side batching of the ragged targets into one padded matrix per tensor
    labels_pad = np.full((B, T_pad), -1, dtype=np.int32)       # -1 -> zero one-hot col
    tboxes_pad = np.full((B, T_pad, 4), 0.25, dtype=np.float32)  # valid dummy boxes
    for b, (lab, box) in enumerate(zip(labels_list, boxes_list)):
        t_b = sizes[b]
        if t_b:
            labels_pad[b, :t_b] = np.asarray(lab, dtype=np.int32)
            tboxes_pad[b, :t_b, :] = np.asarray(box, dtype=np.float32)

    return _cost_blocks_device(pred_logits, pred_boxes,
                               jnp.asarray(labels_pad), jnp.asarray(tboxes_pad),
                               w_class=float(cost_class), w_bbox=float(cost_bbox),
                               w_giou=float(cost_giou))


# --------------------------- Matcher (host glue) --------------------------- #
class HungarianMatcher:
    def __init__(self, cost_class: float = 1.0, cost_bbox: float = 1.0,
                 cost_giou: float = 1.0):
        assert cost_class != 0 or cost_bbox != 0 or cost_giou != 0, "all costs cant be 0"
        self.cost_class = cost_class
        self.cost_bbox = cost_bbox
        self.cost_giou = cost_giou

    def __call__(self, outputs, targets):
        Q = int(outputs["pred_logits"].shape[1])
        labels_list = [t["labels"] for t in targets]
        boxes_list = [t["boxes"] for t in targets]

        C = compute_cost_blocks(outputs["pred_logits"], outputs["pred_boxes"],
                                labels_list, boxes_list,
                                cost_class=self.cost_class,
                                cost_bbox=self.cost_bbox,
                                cost_giou=self.cost_giou)
        C = np.asarray(jax.block_until_ready(C))                    # (B, Q, T_pad)

        # TODO(synk): linear_sum_assignment (Hungarian) is inherently sequential;
        # it stays on host exactly as in the reference implementation.
        indices = []
        for b, box in enumerate(boxes_list):
            t_b = int(box.shape[0])
            ri, ci = linear_sum_assignment(C[b, :Q, :t_b])
            indices.append((ri.astype(np.int64), ci.astype(np.int64)))
        return indices


# -------------------------- pure-JAX reference ------------------------------ #
def _reference_cost(pred_logits_b, pred_boxes_b, labels, boxes, wc, wb, wg):
    prob = jax.nn.softmax(pred_logits_b, axis=-1)
    cost_class = -prob[:, labels]
    cost_bbox = jnp.sum(jnp.abs(pred_boxes_b[:, None, :] - boxes[None, :, :]), axis=-1)

    def corners(x):
        return jnp.concatenate([x[..., :2] - 0.5 * x[..., 2:],
                                x[..., :2] + 0.5 * x[..., 2:]], axis=-1)

    p, t = corners(pred_boxes_b), corners(boxes)
    area_p = (p[:, 2] - p[:, 0]) * (p[:, 3] - p[:, 1])
    area_t = (t[:, 2] - t[:, 0]) * (t[:, 3] - t[:, 1])
    lt = jnp.maximum(p[:, None, :2], t[None, :, :2])
    rb = jnp.minimum(p[:, None, 2:], t[None, :, 2:])
    wh = jnp.clip(rb - lt, 0.0, None)
    inter = wh[..., 0] * wh[..., 1]
    union = area_p[:, None] + area_t[None, :] - inter
    iou = inter / union
    lt2 = jnp.minimum(p[:, None, :2], t[None, :, :2])
    rb2 = jnp.maximum(p[:, None, 2:], t[None, :, 2:])
    wh2 = jnp.clip(rb2 - lt2, 0.0, None)
    area = wh2[..., 0] * wh2[..., 1]
    giou = iou - (area - union) / area
    return wb * cost_bbox + wc * cost_class - wg * giou


# ---------------------------------- main ----------------------------------- #
if __name__ == "__main__":
    B, Q, NUM_CLASSES = 2, 8, 32
    num_tgts = [3, 5]

    key = jax.random.PRNGKey(0)
    k_logits, k_pbox, k_tbox, k_ids = jax.random.split(key, 4)

    pred_logits = jax.random.normal(k_logits, (B, Q, NUM_CLASSES), dtype=jnp.float32)

    def make_boxes(k, n):
        k1, k2 = jax.random.split(k)
        centers = jax.random.uniform(k1, (n, 2), minval=0.2, maxval=0.8)
        sizes = jax.random.uniform(k2, (n, 2), minval=0.05, maxval=0.3)
        return jnp.concatenate([centers, sizes], axis=-1).astype(jnp.float32)

    pred_boxes = make_boxes(k_pbox, B * Q).reshape(B, Q, 4)

    tkeys = jax.random.split(k_tbox, B)
    ikeys = jax.random.split(k_ids, B)
    targets = []
    for b in range(B):
        targets.append({
            "labels": jax.random.randint(ikeys[b], (num_tgts[b],), 0, NUM_CLASSES - 1),
            "boxes": make_boxes(tkeys[b], num_tgts[b]),
        })

    outputs = {"pred_logits": pred_logits, "pred_boxes": pred_boxes}

    # Run the Pallas kernel once and block on its result.
    labels_list = [t["labels"] for t in targets]
    boxes_list = [t["boxes"] for t in targets]
    cost = compute_cost_blocks(pred_logits, pred_boxes, labels_list, boxes_list)
    cost = np.asarray(jax.block_until_ready(cost))                  # (B, Q, T_pad)

    # Sanity check against a pure-JAX reference (loose tolerance: bf16 MXU operands
    # and approx reciprocals in the kernel).
    for b in range(B):
        ref = np.asarray(_reference_cost(pred_logits[b], pred_boxes[b],
                                         labels_list[b], boxes_list[b],
                                         1.0, 1.0, 1.0))
        got = cost[b, :Q, :num_tgts[b]]
        max_err = float(np.max(np.abs(got - ref)))
        assert max_err < 2e-2, f"cost mismatch for image {b}: max_err={max_err}"

    matcher = HungarianMatcher(cost_class=1.0, cost_bbox=1.0, cost_giou=1.0)
    matched = matcher(outputs, targets)
    assert len(matched) == B
    for (ri, ci), n in zip(matched, num_tgts):
        assert ri.shape == (n,) and ci.shape == (n,)

    print("KERNEL_OK")
</pallas_src>

<mosaic_0001>
module attributes {stable_mosaic.version = 11 : i64} {
  func.func @_cost_kernel(%arg0: i32, %arg1: i32, %arg2: memref<1x8x128xf32, #tpu.memory_space<vmem>>, %arg3: memref<1x8x8xf32, #tpu.memory_space<vmem>>, %arg4: memref<1x128x128xbf16, #tpu.memory_space<vmem>>, %arg5: memref<1x8x128xf32, #tpu.memory_space<vmem>>, %arg6: memref<1x8x128xf32, #tpu.memory_space<vmem>>) attributes {dimension_semantics = [#tpu.dimension_semantics<parallel>, #tpu.dimension_semantics<parallel>], iteration_bounds = array<i64: 2, 1>, scalar_prefetch = 0 : i64, scratch_operands = 0 : i64, tpu.core_type = #tpu.core_type<tc>, window_params = [{transform_indices = @transform_0, window_bounds = array<i64: 1, 8, 128>}, {transform_indices = @transform_1, window_bounds = array<i64: 1, 8, 8>}, {transform_indices = @transform_2, window_bounds = array<i64: 1, 128, 128>}, {transform_indices = @transform_3, window_bounds = array<i64: 1, 8, 128>}, {transform_indices = @transform_4, window_bounds = array<i64: 1, 8, 128>}]} {
    %c0 = arith.constant 0 : index
    %c0_0 = arith.constant 0 : index
    %c0_1 = arith.constant 0 : index
    %0 = vector.load %arg2[%c0, %c0_0, %c0_1] : memref<1x8x128xf32, #tpu.memory_space<vmem>>, vector<1x8x128xf32>
    %1 = vector.shape_cast %0 : vector<1x8x128xf32> to vector<8x128xf32>
    %cst = arith.constant dense<0xFF800000> : vector<8xf32>
    %2 = vector.multi_reduction <maximumf>, %1, %cst [1] : vector<8x128xf32> to vector<8xf32>
    %3 = vector.shape_cast %2 : vector<8xf32> to vector<8x1xf32>
    %4 = vector.broadcast %3 : vector<8x1xf32> to vector<8x128xf32>
    %5 = arith.subf %1, %4 : vector<8x128xf32>
    %6 = math.exp %5 : vector<8x128xf32>
    %cst_2 = arith.constant dense<0.000000e+00> : vector<8xf32>
    %7 = vector.multi_reduction <add>, %6, %cst_2 [1] : vector<8x128xf32> to vector<8xf32>
    %8 = vector.shape_cast %7 : vector<8xf32> to vector<8x1xf32>
    %9 = tpu.reciprocal %8 {approx = true} : vector<8x1xf32> -> vector<8x1xf32>
    %cst_3 = arith.constant 1.000000e+00 : f32
    %10 = vector.broadcast %cst_3 : f32 to vector<8x1xf32>
    %11 = arith.mulf %10, %9 : vector<8x1xf32>
    %12 = arith.truncf %6 : vector<8x128xf32> to vector<8x128xbf16>
    %c0_4 = arith.constant 0 : index
    %c0_5 = arith.constant 0 : index
    %c0_6 = arith.constant 0 : index
    %13 = vector.load %arg4[%c0_4, %c0_5, %c0_6] : memref<1x128x128xbf16, #tpu.memory_space<vmem>>, vector<1x128x128xbf16>
    %14 = vector.shape_cast %13 : vector<1x128x128xbf16> to vector<128x128xbf16>
    %cst_7 = arith.constant dense<0.000000e+00> : vector<8x128xf32>
    %15 = tpu.matmul %12, %14, %cst_7 {dimension_numbers = #tpu.dot_dimension_numbers<[1], [0], [0], [1], [0, 0, 1, 1], [], []>} : vector<8x128xbf16>, vector<128x128xbf16>, vector<8x128xf32> -> vector<8x128xf32>
    %c0_8 = arith.constant 0 : index
    %c0_9 = arith.constant 0 : index
    %c0_10 = arith.constant 0 : index
    %16 = vector.load %arg3[%c0_8, %c0_9, %c0_10] : memref<1x8x8xf32, #tpu.memory_space<vmem>>, vector<1x8x8xf32>
    %17 = vector.shape_cast %16 : vector<1x8x8xf32> to vector<8x8xf32>
    %c0_11 = arith.constant 0 : index
    %c0_12 = arith.constant 0 : index
    %c0_13 = arith.constant 0 : index
    %18 = vector.load %arg5[%c0_11, %c0_12, %c0_13] : memref<1x8x128xf32, #tpu.memory_space<vmem>>, vector<1x8x128xf32>
    %19 = vector.shape_cast %18 : vector<1x8x128xf32> to vector<8x128xf32>
    %20 = vector.extract_strided_slice %17 {offsets = [0, 0], sizes = [8, 1], strides = [1, 1]} : vector<8x8xf32> to vector<8x1xf32>
    %21 = vector.extract_strided_slice %17 {offsets = [0, 1], sizes = [8, 1], strides = [1, 1]} : vector<8x8xf32> to vector<8x1xf32>
    %22 = vector.extract_strided_slice %17 {offsets = [0, 2], sizes = [8, 1], strides = [1, 1]} : vector<8x8xf32> to vector<8x1xf32>
    %23 = vector.extract_strided_slice %17 {offsets = [0, 3], sizes = [8, 1], strides = [1, 1]} : vector<8x8xf32> to vector<8x1xf32>
    %24 = vector.extract_strided_slice %17 {offsets = [0, 4], sizes = [8, 1], strides = [1, 1]} : vector<8x8xf32> to vector<8x1xf32>
    %25 = vector.extract_strided_slice %17 {offsets = [0, 5], sizes = [8, 1], strides = [1, 1]} : vector<8x8xf32> to vector<8x1xf32>
    %26 = vector.extract_strided_slice %17 {offsets = [0, 6], sizes = [8, 1], strides = [1, 1]} : vector<8x8xf32> to vector<8x1xf32>
    %27 = vector.extract_strided_slice %17 {offsets = [0, 7], sizes = [8, 1], strides = [1, 1]} : vector<8x8xf32> to vector<8x1xf32>
    %28 = vector.extract_strided_slice %19 {offsets = [0, 0], sizes = [1, 128], strides = [1, 1]} : vector<8x128xf32> to vector<1x128xf32>
    %29 = vector.extract_strided_slice %19 {offsets = [1, 0], sizes = [1, 128], strides = [1, 1]} : vector<8x128xf32> to vector<1x128xf32>
    %30 = vector.extract_strided_slice %19 {offsets = [2, 0], sizes = [1, 128], strides = [1, 1]} : vector<8x128xf32> to vector<1x128xf32>
    %31 = vector.extract_strided_slice %19 {offsets = [3, 0], sizes = [1, 128], strides = [1, 1]} : vector<8x128xf32> to vector<1x128xf32>
    %32 = vector.extract_strided_slice %19 {offsets = [4, 0], sizes = [1, 128], strides = [1, 1]} : vector<8x128xf32> to vector<1x128xf32>
    %33 = vector.extract_strided_slice %19 {offsets = [5, 0], sizes = [1, 128], strides = [1, 1]} : vector<8x128xf32> to vector<1x128xf32>
    %34 = vector.extract_strided_slice %19 {offsets = [6, 0], sizes = [1, 128], strides = [1, 1]} : vector<8x128xf32> to vector<1x128xf32>
    %35 = vector.extract_strided_slice %19 {offsets = [7, 0], sizes = [1, 128], strides = [1, 1]} : vector<8x128xf32> to vector<1x128xf32>
    %36 = vector.broadcast %20 : vector<8x1xf32> to vector<8x128xf32>
    %37 = vector.broadcast %28 : vector<1x128xf32> to vector<8x128xf32>
    %38 = arith.subf %36, %37 : vector<8x128xf32>
    %39 = math.absf %38 : vector<8x128xf32>
    %40 = vector.broadcast %21 : vector<8x1xf32> to vector<8x128xf32>
    %41 = vector.broadcast %29 : vector<1x128xf32> to vector<8x128xf32>
    %42 = arith.subf %40, %41 : vector<8x128xf32>
    %43 = math.absf %42 : vector<8x128xf32>
    %44 = arith.addf %39, %43 : vector<8x128xf32>
    %45 = vector.broadcast %22 : vector<8x1xf32> to vector<8x128xf32>
    %46 = vector.broadcast %30 : vector<1x128xf32> to vector<8x128xf32>
    %47 = arith.subf %45, %46 : vector<8x128xf32>
    %48 = math.absf %47 : vector<8x128xf32>
    %49 = arith.addf %44, %48 : vector<8x128xf32>
    %50 = vector.broadcast %23 : vector<8x1xf32> to vector<8x128xf32>
    %51 = vector.broadcast %31 : vector<1x128xf32> to vector<8x128xf32>
    %52 = arith.subf %50, %51 : vector<8x128xf32>
    %53 = math.absf %52 : vector<8x128xf32>
    %54 = arith.addf %49, %53 : vector<8x128xf32>
    %55 = vector.broadcast %11 : vector<8x1xf32> to vector<8x128xf32>
    %56 = arith.mulf %15, %55 : vector<8x128xf32>
    %57 = arith.subf %54, %56 : vector<8x128xf32>
    %58 = vector.broadcast %26 : vector<8x1xf32> to vector<8x128xf32>
    %59 = vector.broadcast %34 : vector<1x128xf32> to vector<8x128xf32>
    %60 = arith.minimumf %58, %59 : vector<8x128xf32>
    %61 = vector.broadcast %24 : vector<8x1xf32> to vector<8x128xf32>
    %62 = vector.broadcast %32 : vector<1x128xf32> to vector<8x128xf32>
    %63 = arith.maximumf %61, %62 : vector<8x128xf32>
    %64 = arith.subf %60, %63 : vector<8x128xf32>
    %cst_14 = arith.constant 0.000000e+00 : f32
    %65 = vector.broadcast %cst_14 : f32 to vector<8x128xf32>
    %66 = arith.maximumf %64, %65 : vector<8x128xf32>
    %67 = vector.broadcast %27 : vector<8x1xf32> to vector<8x128xf32>
    %68 = vector.broadcast %35 : vector<1x128xf32> to vector<8x128xf32>
    %69 = arith.minimumf %67, %68 : vector<8x128xf32>
    %70 = vector.broadcast %25 : vector<8x1xf32> to vector<8x128xf32>
    %71 = vector.broadcast %33 : vector<1x128xf32> to vector<8x128xf32>
    %72 = arith.maximumf %70, %71 : vector<8x128xf32>
    %73 = arith.subf %69, %72 : vector<8x128xf32>
    %cst_15 = arith.constant 0.000000e+00 : f32
    %74 = vector.broadcast %cst_15 : f32 to vector<8x128xf32>
    %75 = arith.maximumf %73, %74 : vector<8x128xf32>
    %76 = arith.mulf %66, %75 : vector<8x128xf32>
    %77 = arith.subf %26, %24 : vector<8x1xf32>
    %78 = arith.subf %27, %25 : vector<8x1xf32>
    %79 = arith.mulf %77, %78 : vector<8x1xf32>
    %80 = arith.subf %34, %32 : vector<1x128xf32>
    %81 = arith.subf %35, %33 : vector<1x128xf32>
    %82 = arith.mulf %80, %81 : vector<1x128xf32>
    %83 = vector.broadcast %79 : vector<8x1xf32> to vector<8x128xf32>
    %84 = vector.broadcast %82 : vector<1x128xf32> to vector<8x128xf32>
    %85 = arith.addf %83, %84 : vector<8x128xf32>
    %86 = arith.subf %85, %76 : vector<8x128xf32>
    %87 = vector.broadcast %26 : vector<8x1xf32> to vector<8x128xf32>
    %88 = vector.broadcast %34 : vector<1x128xf32> to vector<8x128xf32>
    %89 = arith.maximumf %87, %88 : vector<8x128xf32>
    %90 = vector.broadcast %24 : vector<8x1xf32> to vector<8x128xf32>
    %91 = vector.broadcast %32 : vector<1x128xf32> to vector<8x128xf32>
    %92 = arith.minimumf %90, %91 : vector<8x128xf32>
    %93 = arith.subf %89, %92 : vector<8x128xf32>
    %94 = vector.broadcast %27 : vector<8x1xf32> to vector<8x128xf32>
    %95 = vector.broadcast %35 : vector<1x128xf32> to vector<8x128xf32>
    %96 = arith.maximumf %94, %95 : vector<8x128xf32>
    %97 = vector.broadcast %25 : vector<8x1xf32> to vector<8x128xf32>
    %98 = vector.broadcast %33 : vector<1x128xf32> to vector<8x128xf32>
    %99 = arith.minimumf %97, %98 : vector<8x128xf32>
    %100 = arith.subf %96, %99 : vector<8x128xf32>
    %101 = arith.mulf %93, %100 : vector<8x128xf32>
    %cst_16 = arith.constant 9.99999993E-9 : f32
    %102 = vector.broadcast %cst_16 : f32 to vector<8x128xf32>
    %103 = arith.addf %86, %102 : vector<8x128xf32>
    %104 = tpu.reciprocal %103 {approx = true} : vector<8x128xf32> -> vector<8x128xf32>
    %cst_17 = arith.constant 9.99999993E-9 : f32
    %105 = vector.broadcast %cst_17 : f32 to vector<8x128xf32>
    %106 = arith.addf %101, %105 : vector<8x128xf32>
    %107 = tpu.reciprocal %106 {approx = true} : vector<8x128xf32> -> vector<8x128xf32>
    %108 = arith.mulf %76, %104 : vector<8x128xf32>
    %109 = arith.subf %101, %86 : vector<8x128xf32>
    %110 = arith.mulf %109, %107 : vector<8x128xf32>
    %111 = arith.subf %108, %110 : vector<8x128xf32>
    %cst_18 = arith.constant 1.000000e+00 : f32
    %112 = vector.broadcast %cst_18 : f32 to vector<8x128xf32>
    %113 = arith.mulf %112, %111 : vector<8x128xf32>
    %114 = arith.subf %57, %113 : vector<8x128xf32>
    %c0_19 = arith.constant 0 : index
    %c0_20 = arith.constant 0 : index
    %c0_21 = arith.constant 0 : index
    %115 = vector.load %arg6[%c0_19, %c0_20, %c0_21] : memref<1x8x128xf32, #tpu.memory_space<vmem>>, vector<1x8x128xf32>
    %116 = vector.shape_cast %115 : vector<1x8x128xf32> to vector<8x128xf32>
    %117 = vector.shape_cast %114 : vector<8x128xf32> to vector<1x8x128xf32>
    tpu.vector_store %arg6[%c0_19, %c0_20, %c0_21], %117 {strides = array<i32>} : memref<1x8x128xf32, #tpu.memory_space<vmem>>, vector<1x8x128xf32>,
    return
  }
  func.func @transform_0(%arg0: i32, %arg1: i32) -> (i32, i32, i32) {
    %c0_i32 = arith.constant 0 : i32
    %c0_i32_0 = arith.constant 0 : i32
    return %arg0, %arg1, %c0_i32 : i32, i32, i32
  }
  func.func @transform_1(%arg0: i32, %arg1: i32) -> (i32, i32, i32) {
    %c0_i32 = arith.constant 0 : i32
    %c0_i32_0 = arith.constant 0 : i32
    return %arg0, %arg1, %c0_i32 : i32, i32, i32
  }
  func.func @transform_2(%arg0: i32, %arg1: i32) -> (i32, i32, i32) {
    %c0_i32 = arith.constant 0 : i32
    %c0_i32_0 = arith.constant 0 : i32
    %c0_i32_1 = arith.constant 0 : i32
    return %arg0, %c0_i32, %c0_i32_0 : i32, i32, i32
  }
  func.func @transform_3(%arg0: i32, %arg1: i32) -> (i32, i32, i32) {
    %c0_i32 = arith.constant 0 : i32
    %c0_i32_0 = arith.constant 0 : i32
    %c0_i32_1 = arith.constant 0 : i32
    return %arg0, %c0_i32, %c0_i32_0 : i32, i32, i32
  }
  func.func @transform_4(%arg0: i32, %arg1: i32) -> (i32, i32, i32) {
    %c0_i32 = arith.constant 0 : i32
    %c0_i32_0 = arith.constant 0 : i32
    return %arg0, %arg1, %c0_i32 : i32, i32, i32
  }
}

</mosaic_0001>

<llo_original>
// kernel: _cost_blocks_device.1
$region0: #{_cost_blocks_device.1}
  #allocation0 [shape = 'u32[]', space=smem, size = 0x4, offset = 0x4, fixed_abs, tag = 'smem constant byte address 0x4 - core index']
  #allocation1 [shape = 'u32[144,128]{1,0:T(1,128)}', space=vmem, size = 0x12000, scoped, tag = 'internal scratch']
  %s0 = inlined_call_operand.vmem [shape: f32[2,8,128], index: 0, kind: input, shape index: {}]
  %s1 = inlined_call_operand.vmem [shape: f32[2,8,8], index: 1, kind: input, shape index: {}]
  %s2 = inlined_call_operand.vmem [shape: bf16[2,128,128], index: 2, kind: input, shape index: {}]
  %s3 = inlined_call_operand.vmem [shape: f32[2,8,128], index: 3, kind: input, shape index: {}]
  %s4 = inlined_call_operand.hbm [shape: f32[2,8,128], index: 4, kind: output, shape index: {}]
  %s5 = sld [smem:[#allocation0]]
  $region49: #{_cost_blocks_device.1} parent=0
    _
  %s7 = ssub.s32 1, %s5
  %s8 = scalar_select 0, %s7, %s5
  $region1: #{_cost_blocks_device.1} parent=0
    #allocation2 [shape = 'u8[8192]{0}', space=vmem, size = 0x2000, scoped, tag = 'output window, operand 0']
    #allocation3 [shape = 's32[2]{0}', space=sflag, size = 0x8, scoped, tag = 'scoped memory for _cost_blocks_device.1']
    %9 = vsyncpa [#allocation3], 0
    %s10 = scalar_lea.sflag [#allocation3], 1
    %11 = vsyncpa %s10, 0
    loop: start=0, step=1, limit=4
    $region2: #{_cost_blocks_device.1} parent=1 // loop_pre_header
      _
    $region3: #{_cost_blocks_device.1} parent=1 // loop_header
      %s13 = sphi 0, %s17
      %p14 = scmp.ge.s32.totalorder %s13, 4
      %s20 = sphi 0, %s32
      %s21 = sphi 0, %s28
      %s22 = sphi 0, %s20
      %s23 = sphi 0, %s21
      %s24 = sphi 0, %s22
      %s25 = sphi 0, %s23
      %s37 = sphi 0, %s39
      %s40 = sphi 0, %s37
      %s41 = sphi 0, %s40
      %s57 = sphi 0, %s41
      %s65 = sphi 0, %s67
      %s68 = sphi 0, %s65
      %s69 = sphi 0, %s68
      %s85 = sphi 0, %s69
      %s91 = sphi 0, %s93
      %s94 = sphi 0, %s91
      %s95 = sphi 0, %s94
      %s111 = sphi 0, %s95
      %s117 = sphi 0, %s119
      %s120 = sphi 0, %s117
      %s121 = sphi 0, %s120
      %s137 = sphi 0, %s121
      %s145 = sphi 0, %s147
      %s148 = sphi 0, %s145
      %s149 = sphi 0, %s148
      %s165 = sphi 0, %s149
    $region4: #{_cost_blocks_device.1} parent=1 // loop_header_branch
      %16 = sbr.rel (%p14) target = $region8
    $region5: #{_cost_blocks_device.1} parent=1 // loop_body
      %s18 = ssub.s32 %s13, 1
      %s19 = ssub.s32 %s13, 2
      %s26 = sadd.s32 1, %s21
      %p27 = scmp.ge.s32.totalorder %s26, 1
      %s28 = scalar_select %p27, 0, %s26
      %s29 = sadd.s32 1, %s20
      %s30 = scalar_select %p27, %s29, %s20
      %p31 = scmp.ge.s32.totalorder %s30, 2
      %s32 = scalar_select %p31, 0, %s30
      %s33 = ssub.s32 %s20, %s32
      %s34 = ssub.s32 %s21, %s28
      %s35 = sor.u32 %s33, %s34
      %p36 = scmp.eq.s32.totalorder %s35, 0
      %s38 = sadd.s32 %s37, 1
      %s39 = scalar_select %p36, %s37, %s38
      %p42 = pneg %p36
      %p43 = scmp.eq.s32.totalorder %s13, 1
      %p44 = por %p42, %p43
      %p45 = scmp.ne.s32.totalorder %s37, %s40
      %p46 = scmp.eq.s32.totalorder %s13, 0
      %p47 = por %p45, %p46
      %p48 = scmp.ne.s32.totalorder %s37, %s40
      %p49 = scmp.eq.s32.totalorder %s18, 1
      %p50 = por %p48, %p49
      %p51 = scmp.ne.s32.totalorder %s40, %s41
      %p52 = scmp.eq.s32.totalorder %s18, 0
      %p53 = por %p51, %p52
      %p54 = scmp.ne.s32.totalorder %s40, %s41
      %p55 = scmp.eq.s32.totalorder %s19, 1
      %p56 = por %p54, %p55
      %p58 = scmp.ne.s32.totalorder %s41, %s57
      %p59 = scmp.eq.s32.totalorder %s19, 0
      %p60 = por %p58, %p59
      %s61 = ssub.s32 %s20, %s32
      %s62 = ssub.s32 %s21, %s28
      %s63 = sor.u32 %s61, %s62
      %p64 = scmp.eq.s32.totalorder %s63, 0
      %s66 = sadd.s32 %s65, 1
      %s67 = scalar_select %p64, %s65, %s66
      %p70 = pneg %p64
      %p71 = scmp.eq.s32.totalorder %s13, 1
      %p72 = por %p70, %p71
      %p73 = scmp.ne.s32.totalorder %s65, %s68
      %p74 = scmp.eq.s32.totalorder %s13, 0
      %p75 = por %p73, %p74
      %p76 = scmp.ne.s32.totalorder %s65, %s68
      %p77 = scmp.eq.s32.totalorder %s18, 1
      %p78 = por %p76, %p77
      %p79 = scmp.ne.s32.totalorder %s68, %s69
      %p80 = scmp.eq.s32.totalorder %s18, 0
      %p81 = por %p79, %p80
      %p82 = scmp.ne.s32.totalorder %s68, %s69
      %p83 = scmp.eq.s32.totalorder %s19, 1
      %p84 = por %p82, %p83
      %p86 = scmp.ne.s32.totalorder %s69, %s85
      %p87 = scmp.eq.s32.totalorder %s19, 0
      %p88 = por %p86, %p87
      %s89 = ssub.s32 %s20, %s32
      %p90 = scmp.eq.s32.totalorder %s89, 0
      %s92 = sadd.s32 %s91, 1
      %s93 = scalar_select %p90, %s91, %s92
      %p96 = pneg %p90
      %p97 = scmp.eq.s32.totalorder %s13, 1
      %p98 = por %p96, %p97
      %p99 = scmp.ne.s32.totalorder %s91, %s94
      %p100 = scmp.eq.s32.totalorder %s13, 0
      %p101 = por %p99, %p100
      %p102 = scmp.ne.s32.totalorder %s91, %s94
      %p103 = scmp.eq.s32.totalorder %s18, 1
      %p104 = por %p102, %p103
      %p105 = scmp.ne.s32.totalorder %s94, %s95
      %p106 = scmp.eq.s32.totalorder %s18, 0
      %p107 = por %p105, %p106
      %p108 = scmp.ne.s32.totalorder %s94, %s95
      %p109 = scmp.eq.s32.totalorder %s19, 1
      %p110 = por %p108, %p109
      %p112 = scmp.ne.s32.totalorder %s95, %s111
      %p113 = scmp.eq.s32.totalorder %s19, 0
      %p114 = por %p112, %p113
      %s115 = ssub.s32 %s20, %s32
      %p116 = scmp.eq.s32.totalorder %s115, 0
      %s118 = sadd.s32 %s117, 1
      %s119 = scalar_select %p116, %s117, %s118
      %p122 = pneg %p116
      %p123 = scmp.eq.s32.totalorder %s13, 1
      %p124 = por %p122, %p123
      %p125 = scmp.ne.s32.totalorder %s117, %s120
      %p126 = scmp.eq.s32.totalorder %s13, 0
      %p127 = por %p125, %p126
      %p128 = scmp.ne.s32.totalorder %s117, %s120
      %p129 = scmp.eq.s32.totalorder %s18, 1
      %p130 = por %p128, %p129
      %p131 = scmp.ne.s32.totalorder %s120, %s121
      %p132 = scmp.eq.s32.totalorder %s18, 0
      %p133 = por %p131, %p132
      %p134 = scmp.ne.s32.totalorder %s120, %s121
      %p135 = scmp.eq.s32.totalorder %s19, 1
      %p136 = por %p134, %p135
      %p138 = scmp.ne.s32.totalorder %s121, %s137
      %p139 = scmp.eq.s32.totalorder %s19, 0
      %p140 = por %p138, %p139
      %s141 = ssub.s32 %s20, %s32
      %s142 = ssub.s32 %s21, %s28
      %s143 = sor.u32 %s141, %s142
      %p144 = scmp.eq.s32.totalorder %s143, 0
      %s146 = sadd.s32 %s145, 1
      %s147 = scalar_select %p144, %s145, %s146
      %p150 = pneg %p144
      %p151 = scmp.eq.s32.totalorder %s13, 1
      %p152 = por %p150, %p151
      %p153 = scmp.ne.s32.totalorder %s145, %s148
      %p154 = scmp.eq.s32.totalorder %s13, 0
      %p155 = por %p153, %p154
      %p156 = scmp.ne.s32.totalorder %s145, %s148
      %p157 = scmp.eq.s32.totalorder %s18, 1
      %p158 = por %p156, %p157
      %p159 = scmp.ne.s32.totalorder %s148, %s149
      %p160 = scmp.eq.s32.totalorder %s18, 0
      %p161 = por %p159, %p160
      %p162 = scmp.ne.s32.totalorder %s148, %s149
      %p163 = scmp.eq.s32.totalorder %s19, 1
      %p164 = por %p162, %p163
      %p166 = scmp.ne.s32.totalorder %s149, %s165
      %p167 = scmp.eq.s32.totalorder %s19, 0
      %p168 = por %p166, %p167
      %p169 = scmp.le.s32.totalorder 1, %s13
      %p170 = scmp.lt.s32.totalorder %s13, 3
      %p171 = pnand %p169, %p170
      %p172 = pneg %p171
      // Predicated region
      $region9: #{_cost_blocks_device.1} parent=5 // pred_check
        _
      $region10: #{_cost_blocks_device.1} parent=5 // pred_check_branch
        %174 = sbr.rel (%p171) target = $region12
      $region11: #{_cost_blocks_device.1} parent=5 // pred_region
        %s175 = ssub.s32 %s13, 1
      $region12: #{_cost_blocks_device.1} parent=5 // pred_fallthru
        _
      %p176 = scmp.lt.s32.totalorder %s13, 2
      // Predicated region
      $region13: #{_cost_blocks_device.1} parent=5 // pred_check
        %p177 = pneg %p176
      $region14: #{_cost_blocks_device.1} parent=5 // pred_check_branch
        %179 = sbr.rel (%p177) target = $region16
      $region15: #{_cost_blocks_device.1} parent=5 // pred_region
        // Predicated region
        $region17: #{_cost_blocks_device.1} parent=15 // pred_check
          %p180 = pneg %p47
        $region18: #{_cost_blocks_device.1} parent=15 // pred_check_branch
          %182 = sbr.rel (%p180) target = $region20
        $region19: #{_cost_blocks_device.1} parent=15 // pred_region
          %p183 = scmp.lt.s32.totalorder %s20, 1
          %s184 = scalar_select %p183, %s20, 1
          %p185 = scmp.lt.s32.totalorder %s21, 0
          %s186 = scalar_select %p185, %s21, 0
          %s187 = sadd.s32 %s186, %s184
          %s188 = smul.addr %s187, 8
          %s189 = scalar_lea.vmem %s0, %s188
        $region20: #{_cost_blocks_device.1} parent=15 // pred_fallthru
          _
        // Predicated region
        $region21: #{_cost_blocks_device.1} parent=15 // pred_check
          %p190 = pneg %p75
        $region22: #{_cost_blocks_device.1} parent=15 // pred_check_branch
          %192 = sbr.rel (%p190) target = $region24
        $region23: #{_cost_blocks_device.1} parent=15 // pred_region
          %p193 = scmp.lt.s32.totalorder %s20, 1
          %s194 = scalar_select %p193, %s20, 1
          %p195 = scmp.lt.s32.totalorder %s21, 0
          %s196 = scalar_select %p195, %s21, 0
          %s197 = sadd.s32 %s196, %s194
          %s198 = smul.addr %s197, 8
          %s199 = scalar_lea.vmem %s1, %s198
        $region24: #{_cost_blocks_device.1} parent=15 // pred_fallthru
          _
        // Predicated region
        $region25: #{_cost_blocks_device.1} parent=15 // pred_check
          %p200 = pneg %p101
        $region26: #{_cost_blocks_device.1} parent=15 // pred_check_branch
          %202 = sbr.rel (%p200) target = $region28
        $region27: #{_cost_blocks_device.1} parent=15 // pred_region
          %p203 = scmp.lt.s32.totalorder %s20, 1
          %s204 = scalar_select %p203, %s20, 1
          %s205 = smul.addr %s204, 16
          %s206 = smul.addr %s205, 4
          %s207 = scalar_lea.vmem %s2, %s206
        $region28: #{_cost_blocks_device.1} parent=15 // pred_fallthru
          _
        // Predicated region
        $region29: #{_cost_blocks_device.1} parent=15 // pred_check
          %p208 = pneg %p127
        $region30: #{_cost_blocks_device.1} parent=15 // pred_check_branch
          %210 = sbr.rel (%p208) target = $region32
        $region31: #{_cost_blocks_device.1} parent=15 // pred_region
          %p211 = scmp.lt.s32.totalorder %s20, 1
          %s212 = scalar_select %p211, %s20, 1
          %s213 = smul.addr %s212, 8
          %s214 = scalar_lea.vmem %s3, %s213
        $region32: #{_cost_blocks_device.1} parent=15 // pred_fallthru
          _
      $region16: #{_cost_blocks_device.1} parent=5 // pred_fallthru
        _
      %p215 = scmp.le.s32.totalorder 1, %s13
      %p216 = scmp.lt.s32.totalorder %s13, 3
      %p217 = pnand %p215, %p216
      %p218 = pneg %p217
      // Predicated region
      $region33: #{_cost_blocks_device.1} parent=5 // pred_check
        _
      $region34: #{_cost_blocks_device.1} parent=5 // pred_check_branch
        %220 = sbr.rel (%p217) target = $region36
      $region35: #{_cost_blocks_device.1} parent=5 // pred_region
        %s221 = ssub.s32 %s13, 1
        %p222 = scmp.lt.s32.totalorder %s22, 1
        %s223 = scalar_select %p222, %s22, 1
        %p224 = scmp.lt.s32.totalorder %s23, 0
        %s225 = scalar_select %p224, %s23, 0
        %s226 = sadd.s32 %s225, %s223
        %s227 = smul.addr %s226, 8
        %s228 = scalar_lea.vmem %s0, %s227
        %p229 = pneg %p53
        %p230 = pneg %p50
        %p231 = scmp.lt.s32.totalorder %s22, 1
        %s232 = scalar_select %p231, %s22, 1
        %p233 = scmp.lt.s32.totalorder %s23, 0
        %s234 = scalar_select %p233, %s23, 0
        %s235 = sadd.s32 %s234, %s232
        %s236 = smul.addr %s235, 8
        %s237 = scalar_lea.vmem %s1, %s236
        %p238 = pneg %p81
        %p239 = pneg %p78
        %p240 = scmp.lt.s32.totalorder %s22, 1
        %s241 = scalar_select %p240, %s22, 1
        %s242 = smul.addr %s241, 16
        %s243 = smul.addr %s242, 4
        %s244 = scalar_lea.vmem %s2, %s243
        %p245 = pneg %p107
        %p246 = pneg %p104
        %p247 = scmp.lt.s32.totalorder %s22, 1
        %s248 = scalar_select %p247, %s22, 1
        %s249 = smul.addr %s248, 8
        %s250 = scalar_lea.vmem %s3, %s249
        %p251 = pneg %p133
        %p252 = pneg %p130
        %p253 = pneg %p161
        %p254 = pneg %p158
        %s255 = sand.u32 %s148, 1
        %s256 = scalar_lea.sflag [#allocation3], %s255
        %s257 = sand.u32 %s148, 1
        %s258 = smul.addr %s257, 8
        %s259 = scalar_lea.vmem [#allocation2], %s258
        %p260 = scmp.lt.s32.totalorder %s22, 1
        %s261 = scalar_select %p260, %s22, 1
        %p262 = scmp.lt.s32.totalorder %s23, 0
        %s263 = scalar_select %p262, %s23, 0
        %s264 = sadd.s32 %s263, %s261
        %s265 = smul.addr %s264, 8
        %s266 = scalar_lea.vmem %s0, %s265
        %p267 = scmp.lt.s32.totalorder %s22, 1
        %s268 = scalar_select %p267, %s22, 1
        %p269 = scmp.lt.s32.totalorder %s23, 0
        %s270 = scalar_select %p269, %s23, 0
        %s271 = sadd.s32 %s270, %s268
        %s272 = smul.addr %s271, 8
        %s273 = scalar_lea.vmem %s1, %s272
        %p274 = scmp.lt.s32.totalorder %s22, 1
        %s275 = scalar_select %p274, %s22, 1
        %s276 = smul.addr %s275, 16
        %s277 = smul.addr %s276, 4
        %s278 = scalar_lea.vmem %s2, %s277
        %p279 = scmp.lt.s32.totalorder %s22, 1
        %s280 = scalar_select %p279, %s22, 1
        %s281 = smul.addr %s280, 8
        %s282 = scalar_lea.vmem %s3, %s281
        %v284 = vld [vmem:[%s266] sm:$0xff]
        %285 = vmax.xlane.f32.xlu0 %v284
        %v286 = vpop.xlane.xlu0 %285
        %v287 = vsub.f32 %v284, %v286
        %v288 = vmul.f32 %v287, 1.442695
        %v289 = vpow.pop %v288
        %290 = vadd.xlane.f32.xlu0 %v289
        %v291 = vpop.xlane.xlu0 %290
        %v292 = vrcp.pop %v291
        %v293 = vpack.c.bf16 %v289, %v289
        %v294 = vld [vmem:[%s278] sm:$0xf]
        %v295 = vld [vmem:[%s278 + $0x4] sm:$0xf]
        %v296 = vld [vmem:[%s278 + $0x8] sm:$0xf]
        %v297 = vld [vmem:[%s278 + $0xc] sm:$0xf]
        %v298 = vld [vmem:[%s278 + $0x10] sm:$0xf]
        %v299 = vld [vmem:[%s278 + $0x14] sm:$0xf]
        %v300 = vld [vmem:[%s278 + $0x18] sm:$0xf]
        %v301 = vld [vmem:[%s278 + $0x1c] sm:$0xf]
        %v302 = vld [vmem:[%s278 + $0x20] sm:$0xf]
        %v303 = vld [vmem:[%s278 + $0x24] sm:$0xf]
        %v304 = vld [vmem:[%s278 + $0x28] sm:$0xf]
        %v305 = vld [vmem:[%s278 + $0x2c] sm:$0xf]
        %v306 = vld [vmem:[%s278 + $0x30] sm:$0xf]
        %v307 = vld [vmem:[%s278 + $0x34] sm:$0xf]
        %v308 = vld [vmem:[%s278 + $0x38] sm:$0xf]
        %v309 = vld [vmem:[%s278 + $0x3c] sm:$0xf]
        %v326 = vunpack.c.l.b16 %v294
        %v327 = vunpack.c.l.b16 %v295
        %v328 = vunpack.c.l.b16 %v296
        %v329 = vunpack.c.l.b16 %v297
        %v330 = vunpack.c.l.b16 %v298
        %v331 = vunpack.c.l.b16 %v299
        %v332 = vunpack.c.l.b16 %v300
        %v333 = vunpack.c.l.b16 %v301
        %v334 = vunpack.c.l.b16 %v302
        %v335 = vunpack.c.l.b16 %v303
        %v336 = vunpack.c.l.b16 %v304
        %v337 = vunpack.c.l.b16 %v305
        %v338 = vunpack.c.l.b16 %v306
        %v339 = vunpack.c.l.b16 %v307
        %v340 = vunpack.c.l.b16 %v308
        %v341 = vunpack.c.l.b16 %v309
        %v342 = vpack.c.b16 %v327, %v326
        %v343 = vpack.c.b16 %v329, %v328
        %v344 = vpack.c.b16 %v331, %v330
        %v345 = vpack.c.b16 %v333, %v332
        %v346 = vpack.c.b16 %v335, %v334
        %v347 = vpack.c.b16 %v337, %v336
        %v348 = vpack.c.b16 %v339, %v338
        %v349 = vpack.c.b16 %v341, %v340
        %358 = vmatprep.subr.bf16.mxu0 0
        %359 = vmatpush1.bf16.msra.mxu0 %v342
        %360 = vmatprep.subr.bf16.mxu0 0
        %361 = vmatpush1.bf16.msra.mxu0 %v343
        %362 = vmatprep.subr.bf16.mxu0 0
        %363 = vmatpush1.bf16.msra.mxu0 %v344
        %364 = vmatprep.subr.bf16.mxu0 0
        %365 = vmatpush1.bf16.msra.mxu0 %v345
        %366 = vmatprep.subr.bf16.mxu0 0
        %367 = vmatpush1.bf16.msra.mxu0 %v346
        %368 = vmatprep.subr.bf16.mxu0 0
        %369 = vmatpush1.bf16.msra.mxu0 %v347
        %370 = vmatprep.subr.bf16.mxu0 0
        %371 = vmatpush1.bf16.msra.mxu0 %v348
        %372 = vmatprep.subr.bf16.mxu0 0
        %373 = vmatpush1.bf16.msra.mxu0 %v349
        %374 = vmatprep.subr.bf16.mxu0 0
        %375 = vmatpush1.bf16.msra.mxu0 0
        %376 = vmatprep.subr.bf16.mxu0 0
        %377 = vmatpush1.bf16.msra.mxu0 0
        %378 = vmatprep.subr.bf16.mxu0 0
        %379 = vmatpush1.bf16.msra.mxu0 0
        %380 = vmatprep.subr.bf16.mxu0 0
        %381 = vmatpush1.bf16.msra.mxu0 0
        %382 = vmatprep.subr.bf16.mxu0 0
        %383 = vmatpush1.bf16.msra.mxu0 0
        %384 = vmatprep.subr.bf16.mxu0 0
        %385 = vmatpush1.bf16.msra.mxu0 0
        %386 = vmatprep.subr.bf16.mxu0 0
        %387 = vmatpush1.bf16.msra.mxu0 0
        %388 = vmatprep.subr.bf16.mxu0 0
        %389 = vmatpush1.bf16.msra.mxu0 0
        %390 = vmatprep.mubr.bf16.mxu0 0
        %391 = vmatmul.mubr.bf16.gmra.mrb[0].mxu0 %v293
        %v392 = vpop.f32.mrb[0].mxu0
        %v393 = vadd.f32 0.0, %v392
        %v394 = vpop.f32.mrb[0].mxu0
        %v395 = vpop.f32.mrb[0].mxu0
        %v396 = vpop.f32.mrb[0].mxu0
        %397 = vdwg.mxu0
        %v398 = vld [vmem:[%s273] sm:$0xff]
        %v399 = vld [vmem:[%s282] sm:$0xff]
        %401 = vset.pattern.permute.xlu0 0
        %402 = vperm.xlu0 %401, %v398
        %v403 = vpop.permute.xlu0 %402
        %v405 = vlaneseq
        %v406 = vshrl.u32 %v405, 7
        %v407 = vsub.s32 0, %v406
        %v408 = vrot.slane %v399, %v407
        %v409 = vsub.f32 %v403, %v408
        %v410 = vand.u32 2147483647, %v409
        %411 = vset.pattern.permute.xlu0 1
        %412 = vperm.xlu0 %411, %v398
        %v413 = vpop.permute.xlu0 %412
        %v415 = vlaneseq
        %v416 = vshrl.u32 %v415, 7
        %v417 = vsub.s32 1, %v416
        %v418 = vrot.slane %v399, %v417
        %v419 = vsub.f32 %v413, %v418
        %v420 = vand.u32 2147483647, %v419
        %v421 = vadd.f32 %v410, %v420
        %422 = vset.pattern.permute.xlu0 2
        %423 = vperm.xlu0 %422, %v398
        %v424 = vpop.permute.xlu0 %423
        %v426 = vlaneseq
        %v427 = vshrl.u32 %v426, 7
        %v428 = vsub.s32 2, %v427
        %v429 = vrot.slane %v399, %v428
        %v430 = vsub.f32 %v424, %v429
        %v431 = vand.u32 2147483647, %v430
        %v432 = vadd.f32 %v421, %v431
        %433 = vset.pattern.permute.xlu0 3
        %434 = vperm.xlu0 %433, %v398
        %v435 = vpop.permute.xlu0 %434
        %v437 = vlaneseq
        %v438 = vshrl.u32 %v437, 7
        %v439 = vsub.s32 3, %v438
        %v440 = vrot.slane %v399, %v439
        %v441 = vsub.f32 %v435, %v440
        %v442 = vand.u32 2147483647, %v441
        %v443 = vadd.f32 %v432, %v442
        %v444 = vmul.f32 %v393, %v292
        %v445 = vsub.f32 %v443, %v444
        %446 = vset.pattern.permute.xlu0 6
        %447 = vperm.xlu0 %446, %v398
        %v448 = vpop.permute.xlu0 %447
        %v450 = vlaneseq
        %v451 = vshrl.u32 %v450, 7
        %v452 = vsub.s32 6, %v451
        %v453 = vrot.slane %v399, %v452
        %v454 = vmin.f32 %v448, %v453
        %455 = vset.pattern.permute.xlu0 4
        %456 = vperm.xlu0 %455, %v398
        %v457 = vpop.permute.xlu0 %456
        %v459 = vlaneseq
        %v460 = vshrl.u32 %v459, 7
        %v461 = vsub.s32 4, %v460
        %v462 = vrot.slane %v399, %v461
        %v463 = vmax.f32 %v457, %v462
        %v464 = vsub.f32 %v454, %v463
        %v465 = vmax.f32 %v464, 0.0
        %466 = vset.pattern.permute.xlu0 7
        %467 = vperm.xlu0 %466, %v398
        %v468 = vpop.permute.xlu0 %467
        %v470 = vlaneseq
        %v471 = vshrl.u32 %v470, 7
        %v472 = vsub.s32 7, %v471
        %v473 = vrot.slane %v399, %v472
        %v474 = vmin.f32 %v468, %v473
        %475 = vset.pattern.permute.xlu0 5
        %476 = vperm.xlu0 %475, %v398
        %v477 = vpop.permute.xlu0 %476
        %v479 = vlaneseq
        %v480 = vshrl.u32 %v479, 7
        %v481 = vsub.s32 5, %v480
        %v482 = vrot.slane %v399, %v481
        %v483 = vmax.f32 %v477, %v482
        %v484 = vsub.f32 %v474, %v483
        %v485 = vmax.f32 %v484, 0.0
        %v486 = vmul.f32 %v465, %v485
        %487 = vrot.lane.b32.xlu0 %v398, 2
        %v488 = vpop.permute.xlu0 %487
        %v490 = vsub.f32 %v398, %v488
        %492 = vrot.lane.b32.xlu0 %v490, 127
        %v493 = vpop.permute.xlu0 %492
        %v495 = vmul.f32 %v490, %v493
        %v497 = vrot.slane %v399, 6
        %v499 = vsub.f32 %v399, %v497
        %v501 = vrot.slane %v499, 1
        %v503 = vmul.f32 %v499, %v501
        %505 = vset.pattern.permute.xlu0 6
        %506 = vperm.xlu0 %505, %v495
        %v507 = vpop.permute.xlu0 %506
        %v509 = vlaneseq
        %v510 = vshrl.u32 %v509, 7
        %v511 = vsub.s32 6, %v510
        %v512 = vrot.slane %v503, %v511
        %v513 = vadd.f32 %v507, %v512
        %v514 = vsub.f32 %v513, %v486
        %v515 = vmax.f32 %v448, %v453
        %v516 = vmin.f32 %v457, %v462
        %v517 = vsub.f32 %v515, %v516
        %v518 = vmax.f32 %v468, %v473
        %v519 = vmin.f32 %v477, %v482
        %v520 = vsub.f32 %v518, %v519
        %v521 = vmul.f32 %v517, %v520
        %v522 = vadd.f32 %v514, 1e-08
        %v523 = vrcp.pop %v522
        %v524 = vadd.f32 %v521, 1e-08
        %v525 = vrcp.pop %v524
        %v526 = vmul.f32 %v486, %v523
        %v527 = vsub.f32 %v521, %v514
        %v528 = vmul.f32 %v527, %v525
        %v529 = vsub.f32 %v526, %v528
        %v530 = vsub.f32 %v445, %v529
        %531 = vst [vmem:[%s259] sm:$0xff] %v530
        %s532 = sand.u32 %s148, 1
        %s533 = scalar_lea.sflag [#allocation3], %s532
        %s534 = sand.u32 %s148, 1
        %s535 = smul.addr %s534, 8
        %s536 = scalar_lea.vmem [#allocation2], %s535
        // Predicated region
        $region37: #{_cost_blocks_device.1} parent=35 // pred_check
          %p537 = pneg %p158
        $region38: #{_cost_blocks_device.1} parent=35 // pred_check_branch
          %539 = sbr.rel (%p537) target = $region40
        $region39: #{_cost_blocks_device.1} parent=35 // pred_region
          %s541 = ssub.s32 128, 128
          %542 = vsyncadd %s533, %s541
          %s543 = sadd.s32 %s23, %s22
          %s544 = smul.addr %s543, 128
          %s545 = scalar_lea.hbm %s4, %s544
          %s547 = sshll.u32 %s536, 4
          %s548 = int_to_ptr.vmem [resolvable:$true] %s547
          %550 = dma.vmem_to_hbm [thread:$0]  %s548, 128, %s545, %s533
        $region40: #{_cost_blocks_device.1} parent=35 // pred_fallthru
          _
      $region36: #{_cost_blocks_device.1} parent=5 // pred_fallthru
        _
      %p551 = scmp.le.s32.totalorder 2, %s13
      // Predicated region
      $region41: #{_cost_blocks_device.1} parent=5 // pred_check
        %p552 = pneg %p551
      $region42: #{_cost_blocks_device.1} parent=5 // pred_check_branch
        %554 = sbr.rel (%p552) target = $region44
      $region43: #{_cost_blocks_device.1} parent=5 // pred_region
        %s555 = ssub.s32 %s13, 2
        // Predicated region
        $region45: #{_cost_blocks_device.1} parent=43 // pred_check
          %p556 = pneg %p164
        $region46: #{_cost_blocks_device.1} parent=43 // pred_check_branch
          %558 = sbr.rel (%p556) target = $region48
        $region47: #{_cost_blocks_device.1} parent=43 // pred_region
          %s559 = sand.u32 %s149, 1
          %s560 = scalar_lea.sflag [#allocation3], %s559
          %s561 = sand.u32 %s149, 1
          %s562 = smul.addr %s561, 8
          %s563 = scalar_lea.vmem [#allocation2], %s562
          %564 = dma.done %s560, 128
        $region48: #{_cost_blocks_device.1} parent=43 // pred_fallthru
          _
      $region44: #{_cost_blocks_device.1} parent=5 // pred_fallthru
        _
    $region6: #{_cost_blocks_device.1} parent=1 // loop_footer
      %s17 = sadd.s32 1, %s13
    $region7: #{_cost_blocks_device.1} parent=1 // loop_footer_branch
      %12 = sbr.rel target = $region3
    $region8: #{_cost_blocks_device.1} parent=1 // loop_exit
      _
    %565 = vsyncpa [#allocation3], 1
    %s566 = scalar_lea.sflag [#allocation3], 1
    %567 = vsyncpa %s566, 1

</llo_original>
